<compile_context>
chip_gen: v7x
topology: tpu7x:2x2x1
jax: 0.10.0
libtpu: 0.0.40
codegen_flags: <defaults>
</compile_context>

<pallas_src>
import functools

import jax
import jax.numpy as jnp
from jax.experimental import pallas as pl
from jax.experimental.pallas import tpu as pltpu

LANE = 128       # vreg lane width
SUBLANE = 16     # bf16 sublane packing (rows)


def _cdiv(a, b):
    return (a + b - 1) // b


def _round_up(v, m):
    return _cdiv(v, m) * m


# ---------------------------------------------------------------------------
# Hardware queries (Python-level, outside the jitted hot path)
# ---------------------------------------------------------------------------
def _device_kind():
    try:
        return jax.devices()[0].device_kind.lower()
    except Exception:
        return ""


def _num_tensorcores():
    # v7x exposes 2 TensorCores per chip behind one Pallas grid; splitting the
    # batch grid only helps there (v4/v5p megacore also has 2 TCs).
    kind = _device_kind()
    if "7" in kind or "v4" in kind or "v5p" in kind:
        return 2
    return 1


def _vmem_budget_bytes():
    # Physical VMEM per TensorCore with headroom for compiler scratch /
    # double-buffered IO tiles: ~96 MiB on v5e/v6e, ~48 MiB on v7x.
    try:
        cap = int(pltpu.get_tpu_info().vmem_capacity_bytes)
    except Exception:
        cap = 64 << 20          # conservative (v7x-sized) fallback
    return int(cap * 3 // 4)


# ---------------------------------------------------------------------------
# Kernels
# ---------------------------------------------------------------------------
def _mlp_kernel_resident(x_ref, w1_ref, b1_ref, w2_ref, b2_ref, o_ref):
    # One batch tile; both weight matrices are VMEM-resident (constant index).
    h = jnp.dot(x_ref[...], w1_ref[...], preferred_element_type=jnp.float32)
    h = jnp.maximum(h + b1_ref[...], 0.0)                      # bias + ReLU (f32)
    y = jnp.dot(h.astype(w2_ref.dtype), w2_ref[...],
                preferred_element_type=jnp.float32)
    o_ref[...] = (y + b2_ref[...]).astype(o_ref.dtype)


def _mlp_kernel_hid_tiled(x_ref, w1_ref, b1_ref, w2_ref, b2_ref, o_ref, acc_ref):
    # Large-weight fallback: stream hidden-dim tiles of W1 (N) / W2 (K) and
    # accumulate the second matmul in an f32 VMEM scratch.
    k = pl.program_id(1)

    @pl.when(k == 0)
    def _():
        acc_ref[...] = jnp.zeros_like(acc_ref)

    h = jnp.dot(x_ref[...], w1_ref[...], preferred_element_type=jnp.float32)
    h = jnp.maximum(h + b1_ref[...], 0.0)
    acc_ref[...] += jnp.dot(h.astype(w2_ref.dtype), w2_ref[...],
                            preferred_element_type=jnp.float32)

    @pl.when(k == pl.num_programs(1) - 1)
    def _():
        o_ref[...] = (acc_ref[...] + b2_ref[...]).astype(o_ref.dtype)


# ---------------------------------------------------------------------------
# Tiling / VMEM sizing helpers (all static Python)
# ---------------------------------------------------------------------------
def _choose_block_b(batch, multi_core):
    batch_s = _round_up(batch, SUBLANE)
    # Balanced tiles of <= 256 rows (full MXU M fill on v6e/v7x), instead of a
    # fixed 256 that over-pads odd batches.
    num_tiles = _cdiv(batch_s, 256)
    if multi_core and batch_s >= 2 * SUBLANE:
        num_tiles = _round_up(max(num_tiles, 2), 2)   # keep both TCs busy (v7x)
    return _round_up(_cdiv(batch_s, num_tiles), SUBLANE)


def _resident_vmem_bytes(block_b, in_sz, hid_p, out_p, cdt_bytes, out_bytes):
    # Default pipeline double-buffers every operand.
    weights = (in_sz * hid_p + hid_p * out_p) * cdt_bytes + (hid_p + out_p) * 4
    io = block_b * in_sz * cdt_bytes + block_b * out_p * out_bytes
    return 2 * (weights + io) + (2 << 20)


def _choose_block_h(hid_p, in_sz, out_p, block_b, cdt_bytes, out_bytes, budget):
    # Largest hidden tile (multiple of 128, dividing hid_p) that fits VMEM.
    lanes = hid_p // LANE
    for g in range(lanes, 0, -1):
        if lanes % g:
            continue
        block_h = g * LANE
        need = (2 * ((in_sz * block_h + block_h * out_p) * cdt_bytes
                     + block_h * 4 + out_p * 4
                     + block_b * in_sz * cdt_bytes
                     + block_b * out_p * out_bytes)
                + block_b * out_p * 4            # f32 accumulator scratch
                + (2 << 20))
        if need <= budget:
            return block_h
    return LANE


# ---------------------------------------------------------------------------
# Parameter preparation — done ONCE, outside the per-call hot path
# ---------------------------------------------------------------------------
def prepare_params(w1, b1, w2, b2, compute_dtype=jnp.bfloat16):
    """Cast weights to the compute dtype and zero-pad hidden/output feature
    (lane) dims to multiples of 128. The input-feature (K) dim stays unpadded
    (Mosaic handles K < 128 internally); lane-density only pays on the hidden
    dim and the output store. Biases accepted as (H,) or (1, H)."""
    w1 = jnp.asarray(w1)
    w2 = jnp.asarray(w2)
    b1 = jnp.asarray(b1).reshape(1, -1)
    b2 = jnp.asarray(b2).reshape(1, -1)
    input_size, hidden_size = w1.shape
    output_size = w2.shape[1]
    hid_p = _round_up(hidden_size, LANE)
    out_p = _round_up(output_size, LANE)
    w1_p = jnp.pad(w1.astype(compute_dtype),
                   ((0, 0), (0, hid_p - hidden_size)))
    b1_p = jnp.pad(b1.astype(jnp.float32), ((0, 0), (0, hid_p - hidden_size)))
    w2_p = jnp.pad(w2.astype(compute_dtype),
                   ((0, hid_p - hidden_size), (0, out_p - output_size)))
    b2_p = jnp.pad(b2.astype(jnp.float32), ((0, 0), (0, out_p - output_size)))
    return (w1_p, b1_p, w2_p, b2_p), (input_size, hidden_size, output_size)


# ---------------------------------------------------------------------------
# Forward
# ---------------------------------------------------------------------------
@functools.partial(
    jax.jit,
    static_argnames=("dims", "out_dtype", "multi_core", "vmem_budget",
                     "force_block_h"))
def mlp_forward(x, w1_p, b1_p, w2_p, b2_p, *, dims, out_dtype,
                multi_core, vmem_budget, force_block_h=None):
    input_size, hidden_size, output_size = dims
    batch = x.shape[0]
    assert x.shape[1] == input_size
    hid_p = w1_p.shape[1]
    out_p = w2_p.shape[1]
    cdt = w1_p.dtype
    cdt_bytes = jnp.dtype(cdt).itemsize
    out_dtype = jnp.dtype(out_dtype)
    out_bytes = out_dtype.itemsize

    block_b = _choose_block_b(batch, multi_core)
    batch_p = _round_up(batch, block_b)
    n_b = batch_p // block_b

    # Only x is padded / cast per call (zero batch padding; sliced off below).
    x_p = jnp.pad(x.astype(cdt), ((0, batch_p - batch), (0, 0)))

    weight_hbm = ((w1_p.size + w2_p.size) * cdt_bytes
                  + (b1_p.size + b2_p.size) * 4)
    cost = pl.CostEstimate(
        flops=2 * batch * (input_size * hidden_size
                           + hidden_size * output_size),
        transcendentals=0,
        bytes_accessed=(weight_hbm + batch_p * input_size * cdt_bytes
                        + batch_p * out_p * out_bytes),
    )

    resident_need = _resident_vmem_bytes(block_b, input_size, hid_p, out_p,
                                         cdt_bytes, out_bytes)
    use_resident = (force_block_h is None) and (resident_need <= vmem_budget)

    if use_resident:
        # Weights / biases fully VMEM-resident (constant index map, no
        # re-streaming); grid only over the batch.
        out_padded = pl.pallas_call(
            _mlp_kernel_resident,
            out_shape=jax.ShapeDtypeStruct((batch_p, out_p), out_dtype),
            grid_spec=pltpu.PrefetchScalarGridSpec(
                num_scalar_prefetch=0,
                grid=(n_b,),
                in_specs=[
                    pl.BlockSpec((block_b, input_size), lambda i: (i, 0)),
                    pl.BlockSpec((input_size, hid_p), lambda i: (0, 0)),
                    pl.BlockSpec((1, hid_p), lambda i: (0, 0)),
                    pl.BlockSpec((hid_p, out_p), lambda i: (0, 0)),
                    pl.BlockSpec((1, out_p), lambda i: (0, 0)),
                ],
                out_specs=pl.BlockSpec((block_b, out_p), lambda i: (i, 0)),
            ),
            compiler_params=pltpu.CompilerParams(
                dimension_semantics=("parallel",),
                vmem_limit_bytes=int(min(vmem_budget,
                                         max(resident_need, 32 << 20))),
            ),
            cost_estimate=cost,
        )(x_p, w1_p, b1_p, w2_p, b2_p)
    else:
        # Weights too large to keep resident: add a grid axis over the hidden
        # dim (reduction axis last), accumulate fc2 into an f32 scratch.
        # TODO(synk): single-buffer the constant-index b2 spec once
        # pipeline_mode=pl.Buffered(1) is verified on the target jaxlib.
        block_h = (force_block_h if force_block_h is not None else
                   _choose_block_h(hid_p, input_size, out_p, block_b,
                                   cdt_bytes, out_bytes, vmem_budget))
        n_h = hid_p // block_h
        out_padded = pl.pallas_call(
            _mlp_kernel_hid_tiled,
            out_shape=jax.ShapeDtypeStruct((batch_p, out_p), out_dtype),
            grid_spec=pltpu.PrefetchScalarGridSpec(
                num_scalar_prefetch=0,
                grid=(n_b, n_h),
                in_specs=[
                    pl.BlockSpec((block_b, input_size), lambda i, k: (i, 0)),
                    pl.BlockSpec((input_size, block_h), lambda i, k: (0, k)),
                    pl.BlockSpec((1, block_h), lambda i, k: (0, k)),
                    pl.BlockSpec((block_h, out_p), lambda i, k: (k, 0)),
                    pl.BlockSpec((1, out_p), lambda i, k: (0, 0)),
                ],
                out_specs=pl.BlockSpec((block_b, out_p), lambda i, k: (i, 0)),
                scratch_shapes=[pltpu.VMEM((block_b, out_p), jnp.float32)],
            ),
            compiler_params=pltpu.CompilerParams(
                dimension_semantics=("parallel", "arbitrary"),
                vmem_limit_bytes=int(vmem_budget),
            ),
            cost_estimate=cost,
        )(x_p, w1_p, b1_p, w2_p, b2_p)

    # Strip batch / output-feature padding.
    return out_padded[:batch, :output_size]


class PallasMLP:
    """Pallas equivalent of the PyTorch MLP: fc2(relu(fc1(x)))."""

    def __init__(self, w1, b1, w2, b2, compute_dtype=jnp.bfloat16):
        (self.w1_p, self.b1_p, self.w2_p, self.b2_p), self.dims = \
            prepare_params(w1, b1, w2, b2, compute_dtype)
        self._multi_core = _num_tensorcores() > 1
        self._vmem_budget = _vmem_budget_bytes()

    def __call__(self, x, out_dtype=None, force_block_h=None):
        out_dtype = jnp.dtype(x.dtype if out_dtype is None else out_dtype)
        return mlp_forward(
            x, self.w1_p, self.b1_p, self.w2_p, self.b2_p,
            dims=self.dims, out_dtype=out_dtype,
            multi_core=self._multi_core, vmem_budget=self._vmem_budget,
            force_block_h=force_block_h)


def init_params(key, input_size, hidden_size, output_size, dtype=jnp.float32):
    """Deterministic init mimicking torch.nn.Linear: U(-1/sqrt(fan_in), +).
    Weights are stored transposed vs. PyTorch; biases are 1-D like PyTorch."""
    k1, k2, k3, k4 = jax.random.split(key, 4)
    bound1 = 1.0 / (input_size ** 0.5)
    bound2 = 1.0 / (hidden_size ** 0.5)
    w1 = jax.random.uniform(k1, (input_size, hidden_size), dtype, -bound1, bound1)
    b1 = jax.random.uniform(k2, (hidden_size,), dtype, -bound1, bound1)
    w2 = jax.random.uniform(k3, (hidden_size, output_size), dtype, -bound2, bound2)
    b2 = jax.random.uniform(k4, (output_size,), dtype, -bound2, bound2)
    return w1, b1, w2, b2


def _ref_bf16(x, w1, b1, w2, b2):
    # Reference with the same bf16-matmul / f32-accumulate numerics.
    h = jnp.maximum(
        jnp.dot(x.astype(jnp.bfloat16), w1.astype(jnp.bfloat16),
                preferred_element_type=jnp.float32) + b1.reshape(1, -1), 0.0)
    return jnp.dot(h.astype(jnp.bfloat16), w2.astype(jnp.bfloat16),
                   preferred_element_type=jnp.float32) + b2.reshape(1, -1)


if __name__ == "__main__":
    key = jax.random.PRNGKey(0)

    # ---- Test 1: small shapes, resident-weight fast path --------------------
    batch, input_size, hidden_size, output_size = 256, 32, 64, 16
    kx, kp = jax.random.split(key)
    x = jax.random.normal(kx, (batch, input_size), jnp.float32)
    w1, b1, w2, b2 = init_params(kp, input_size, hidden_size, output_size)

    mlp = PallasMLP(w1, b1, w2, b2)
    out = jax.block_until_ready(mlp(x))
    assert out.shape == (batch, output_size)

    ref = _ref_bf16(x, w1, b1, w2, b2)
    assert jnp.allclose(out, ref, atol=2e-3, rtol=2e-3)

    ref_f32 = jnp.maximum(x @ w1 + b1.reshape(1, -1), 0.0) @ w2 + b2.reshape(1, -1)
    assert jnp.allclose(out, ref_f32, atol=5e-2, rtol=5e-2)

    # ---- Test 2: exercise the hidden-dim streaming fallback -----------------
    batch2, in2, hid2, out2 = 96, 48, 320, 24
    kx2, kp2 = jax.random.split(kp)
    x2 = jax.random.normal(kx2, (batch2, in2), jnp.float32)
    w1b, b1b, w2b, b2b = init_params(kp2, in2, hid2, out2)
    mlp2 = PallasMLP(w1b, b1b, w2b, b2b)
    out2_arr = jax.block_until_ready(mlp2(x2, force_block_h=LANE))
    assert out2_arr.shape == (batch2, out2)
    ref2 = _ref_bf16(x2, w1b, b1b, w2b, b2b)
    assert jnp.allclose(out2_arr, ref2, atol=2e-3, rtol=2e-3)

    print("KERNEL_OK")
</pallas_src>

<mosaic_0001>
module attributes {stable_mosaic.version = 11 : i64} {
  func.func @_mlp_kernel_resident(%arg0: i32, %arg1: memref<256x32xbf16, #tpu.memory_space<vmem>>, %arg2: memref<32x128xbf16, #tpu.memory_space<vmem>>, %arg3: memref<1x128xf32, #tpu.memory_space<vmem>>, %arg4: memref<128x128xbf16, #tpu.memory_space<vmem>>, %arg5: memref<1x128xf32, #tpu.memory_space<vmem>>, %arg6: memref<256x128xf32, #tpu.memory_space<vmem>>) attributes {dimension_semantics = [#tpu.dimension_semantics<parallel>], iteration_bounds = array<i64: 1>, scalar_prefetch = 0 : i64, scratch_operands = 0 : i64, tpu.core_type = #tpu.core_type<tc>, window_params = [{transform_indices = @transform_0, window_bounds = array<i64: 256, 32>}, {pipeline_mode = #tpu.pipeline_mode<synchronous>, transform_indices = @transform_1, window_bounds = array<i64: 32, 128>}, {pipeline_mode = #tpu.pipeline_mode<synchronous>, transform_indices = @transform_2, window_bounds = array<i64: 1, 128>}, {pipeline_mode = #tpu.pipeline_mode<synchronous>, transform_indices = @transform_3, window_bounds = array<i64: 128, 128>}, {pipeline_mode = #tpu.pipeline_mode<synchronous>, transform_indices = @transform_4, window_bounds = array<i64: 1, 128>}, {transform_indices = @transform_5, window_bounds = array<i64: 256, 128>}]} {
    %c0 = arith.constant 0 : index
    %c0_0 = arith.constant 0 : index
    %0 = vector.load %arg1[%c0, %c0_0] : memref<256x32xbf16, #tpu.memory_space<vmem>>, vector<256x32xbf16>
    %c0_1 = arith.constant 0 : index
    %c0_2 = arith.constant 0 : index
    %1 = vector.load %arg2[%c0_1, %c0_2] : memref<32x128xbf16, #tpu.memory_space<vmem>>, vector<32x128xbf16>
    %cst = arith.constant dense<0.000000e+00> : vector<256x128xf32>
    %2 = tpu.matmul %0, %1, %cst {dimension_numbers = #tpu.dot_dimension_numbers<[1], [0], [0], [1], [0, 0, 1, 1], [], []>} : vector<256x32xbf16>, vector<32x128xbf16>, vector<256x128xf32> -> vector<256x128xf32>
    %c0_3 = arith.constant 0 : index
    %c0_4 = arith.constant 0 : index
    %3 = vector.load %arg3[%c0_3, %c0_4] : memref<1x128xf32, #tpu.memory_space<vmem>>, vector<1x128xf32>
    %4 = vector.broadcast %3 : vector<1x128xf32> to vector<256x128xf32>
    %5 = arith.addf %2, %4 : vector<256x128xf32>
    %cst_5 = arith.constant 0.000000e+00 : f32
    %6 = vector.broadcast %cst_5 : f32 to vector<256x128xf32>
    %7 = arith.maximumf %5, %6 : vector<256x128xf32>
    %8 = arith.truncf %7 : vector<256x128xf32> to vector<256x128xbf16>
    %c0_6 = arith.constant 0 : index
    %c0_7 = arith.constant 0 : index
    %9 = vector.load %arg4[%c0_6, %c0_7] : memref<128x128xbf16, #tpu.memory_space<vmem>>, vector<128x128xbf16>
    %cst_8 = arith.constant dense<0.000000e+00> : vector<256x128xf32>
    %10 = tpu.matmul %8, %9, %cst_8 {dimension_numbers = #tpu.dot_dimension_numbers<[1], [0], [0], [1], [0, 0, 1, 1], [], []>} : vector<256x128xbf16>, vector<128x128xbf16>, vector<256x128xf32> -> vector<256x128xf32>
    %c0_9 = arith.constant 0 : index
    %c0_10 = arith.constant 0 : index
    %11 = vector.load %arg5[%c0_9, %c0_10] : memref<1x128xf32, #tpu.memory_space<vmem>>, vector<1x128xf32>
    %12 = vector.broadcast %11 : vector<1x128xf32> to vector<256x128xf32>
    %13 = arith.addf %10, %12 : vector<256x128xf32>
    %c0_11 = arith.constant 0 : index
    %c0_12 = arith.constant 0 : index
    %14 = vector.load %arg6[%c0_11, %c0_12] : memref<256x128xf32, #tpu.memory_space<vmem>>, vector<256x128xf32>
    tpu.vector_store %arg6[%c0_11, %c0_12], %13 {strides = array<i32>} : memref<256x128xf32, #tpu.memory_space<vmem>>, vector<256x128xf32>,
    return
  }
  func.func @transform_0(%arg0: i32) -> (i32, i32) {
    %c0_i32 = arith.constant 0 : i32
    %c0_i32_0 = arith.constant 0 : i32
    return %arg0, %c0_i32 : i32, i32
  }
  func.func @transform_1(%arg0: i32) -> (i32, i32) {
    %c0_i32 = arith.constant 0 : i32
    %c0_i32_0 = arith.constant 0 : i32
    %c0_i32_1 = arith.constant 0 : i32
    return %c0_i32, %c0_i32_0 : i32, i32
  }
  func.func @transform_2(%arg0: i32) -> (i32, i32) {
    %c0_i32 = arith.constant 0 : i32
    %c0_i32_0 = arith.constant 0 : i32
    %c0_i32_1 = arith.constant 0 : i32
    return %c0_i32, %c0_i32_0 : i32, i32
  }
  func.func @transform_3(%arg0: i32) -> (i32, i32) {
    %c0_i32 = arith.constant 0 : i32
    %c0_i32_0 = arith.constant 0 : i32
    %c0_i32_1 = arith.constant 0 : i32
    return %c0_i32, %c0_i32_0 : i32, i32
  }
  func.func @transform_4(%arg0: i32) -> (i32, i32) {
    %c0_i32 = arith.constant 0 : i32
    %c0_i32_0 = arith.constant 0 : i32
    %c0_i32_1 = arith.constant 0 : i32
    return %c0_i32, %c0_i32_0 : i32, i32
  }
  func.func @transform_5(%arg0: i32) -> (i32, i32) {
    %c0_i32 = arith.constant 0 : i32
    %c0_i32_0 = arith.constant 0 : i32
    return %arg0, %c0_i32 : i32, i32
  }
}

</mosaic_0001>

<llo_original>
// kernel: mlp_forward.1
$region0: #{mlp_forward.1}
  #allocation0 [shape = 'u32[]', space=smem, size = 0x4, offset = 0x4, fixed_abs, tag = 'smem constant byte address 0x4 - core index']
  #allocation1 [shape = 'u32[144,128]{1,0:T(1,128)}', space=vmem, size = 0x12000, scoped, tag = 'internal scratch']
  %s0 = inlined_call_operand.vmem [shape: bf16[256,32], index: 0, kind: input, shape index: {}]
  %s1 = inlined_call_operand.vmem [shape: bf16[32,128], index: 1, kind: input, shape index: {}]
  %s2 = inlined_call_operand.vmem [shape: f32[1,128], index: 2, kind: input, shape index: {}]
  %s3 = inlined_call_operand.vmem [shape: bf16[128,128], index: 3, kind: input, shape index: {}]
  %s4 = inlined_call_operand.vmem [shape: f32[1,128], index: 4, kind: input, shape index: {}]
  %s5 = inlined_call_operand.vmem [shape: f32[256,128], index: 5, kind: output, shape index: {}]
  %s6 = sld [smem:[#allocation0]]
  $region30: #{mlp_forward.1} parent=0
    _
  %s8 = ssub.s32 1, %s6
  %s9 = scalar_select 0, %s8, %s6
  // Predicated region
  $region2: #{mlp_forward.1} parent=0 // pred_check
    _
  $region3: #{mlp_forward.1} parent=0 // pred_check_branch
    %11 = sbr.rel (0) target = $region5
  $region4: #{mlp_forward.1} parent=0 // pred_region
    _
  $region5: #{mlp_forward.1} parent=0 // pred_fallthru
    _
  // Predicated region
  $region6: #{mlp_forward.1} parent=0 // pred_check
    _
  $region7: #{mlp_forward.1} parent=0 // pred_check_branch
    %13 = sbr.rel (0) target = $region9
  $region8: #{mlp_forward.1} parent=0 // pred_region
    _
  $region9: #{mlp_forward.1} parent=0 // pred_fallthru
    _
  // Predicated region
  $region10: #{mlp_forward.1} parent=0 // pred_check
    _
  $region11: #{mlp_forward.1} parent=0 // pred_check_branch
    %15 = sbr.rel (0) target = $region13
  $region12: #{mlp_forward.1} parent=0 // pred_region
    _
  $region13: #{mlp_forward.1} parent=0 // pred_fallthru
    _
  // Predicated region
  $region14: #{mlp_forward.1} parent=0 // pred_check
    _
  $region15: #{mlp_forward.1} parent=0 // pred_check_branch
    %17 = sbr.rel (0) target = $region17
  $region16: #{mlp_forward.1} parent=0 // pred_region
    _
  $region17: #{mlp_forward.1} parent=0 // pred_fallthru
    _
  // Predicated region
  $region18: #{mlp_forward.1} parent=0 // pred_check
    _
  $region19: #{mlp_forward.1} parent=0 // pred_check_branch
    %19 = sbr.rel (0) target = $region21
  $region20: #{mlp_forward.1} parent=0 // pred_region
    _
  $region21: #{mlp_forward.1} parent=0 // pred_fallthru
    _
  %v21 = vld [vmem:[%s0] sm:$0xf]
  %v22 = vld [vmem:[%s0 + $0x4] sm:$0xf]
  %v23 = vld [vmem:[%s0 + $0x8] sm:$0xf]
  %v24 = vld [vmem:[%s0 + $0xc] sm:$0xf]
  %v25 = vld [vmem:[%s0 + $0x10] sm:$0xf]
  %v26 = vld [vmem:[%s0 + $0x14] sm:$0xf]
  %v27 = vld [vmem:[%s0 + $0x18] sm:$0xf]
  %v28 = vld [vmem:[%s0 + $0x1c] sm:$0xf]
  %v29 = vld [vmem:[%s0 + $0x20] sm:$0xf]
  %v30 = vld [vmem:[%s0 + $0x24] sm:$0xf]
  %v31 = vld [vmem:[%s0 + $0x28] sm:$0xf]
  %v32 = vld [vmem:[%s0 + $0x2c] sm:$0xf]
  %v33 = vld [vmem:[%s0 + $0x30] sm:$0xf]
  %v34 = vld [vmem:[%s0 + $0x34] sm:$0xf]
  %v35 = vld [vmem:[%s0 + $0x38] sm:$0xf]
  %v36 = vld [vmem:[%s0 + $0x3c] sm:$0xf]
  %v37 = vld [vmem:[%s0 + $0x40] sm:$0xf]
  %v38 = vld [vmem:[%s0 + $0x44] sm:$0xf]
  %v39 = vld [vmem:[%s0 + $0x48] sm:$0xf]
  %v40 = vld [vmem:[%s0 + $0x4c] sm:$0xf]
  %v41 = vld [vmem:[%s0 + $0x50] sm:$0xf]
  %v42 = vld [vmem:[%s0 + $0x54] sm:$0xf]
  %v43 = vld [vmem:[%s0 + $0x58] sm:$0xf]
  %v44 = vld [vmem:[%s0 + $0x5c] sm:$0xf]
  %v45 = vld [vmem:[%s0 + $0x60] sm:$0xf]
  %v46 = vld [vmem:[%s0 + $0x64] sm:$0xf]
  %v47 = vld [vmem:[%s0 + $0x68] sm:$0xf]
  %v48 = vld [vmem:[%s0 + $0x6c] sm:$0xf]
  %v49 = vld [vmem:[%s0 + $0x70] sm:$0xf]
  %v50 = vld [vmem:[%s0 + $0x74] sm:$0xf]
  %v51 = vld [vmem:[%s0 + $0x78] sm:$0xf]
  %v52 = vld [vmem:[%s0 + $0x7c] sm:$0xf]
  %v53 = vld [vmem:[%s1] sm:$0xf]
  %v54 = vld [vmem:[%s1 + $0x4] sm:$0xf]
  %v55 = vld [vmem:[%s1 + $0x8] sm:$0xf]
  %v56 = vld [vmem:[%s1 + $0xc] sm:$0xf]
  %v57 = vld [vmem:[%s2] sm:$0x1]
  %v59 = vlaneseq
  %v60 = vshrl.u32 %v59, 7
  %v61 = vsub.s32 0, %v60
  %v62 = vrot.slane %v57, %v61
  %v96 = vunpack.c.l.b16 %v21
  %v97 = vunpack.c.l.b16 %v22
  %v98 = vunpack.c.l.b16 %v23
  %v99 = vunpack.c.l.b16 %v24
  %v100 = vunpack.c.l.b16 %v25
  %v101 = vunpack.c.l.b16 %v26
  %v102 = vunpack.c.l.b16 %v27
  %v103 = vunpack.c.l.b16 %v28
  %v104 = vunpack.c.l.b16 %v29
  %v105 = vunpack.c.l.b16 %v30
  %v106 = vunpack.c.l.b16 %v31
  %v107 = vunpack.c.l.b16 %v32
  %v108 = vunpack.c.l.b16 %v33
  %v109 = vunpack.c.l.b16 %v34
  %v110 = vunpack.c.l.b16 %v35
  %v111 = vunpack.c.l.b16 %v36
  %v112 = vunpack.c.l.b16 %v37
  %v113 = vunpack.c.l.b16 %v38
  %v114 = vunpack.c.l.b16 %v39
  %v115 = vunpack.c.l.b16 %v40
  %v116 = vunpack.c.l.b16 %v41
  %v117 = vunpack.c.l.b16 %v42
  %v118 = vunpack.c.l.b16 %v43
  %v119 = vunpack.c.l.b16 %v44
  %v120 = vunpack.c.l.b16 %v45
  %v121 = vunpack.c.l.b16 %v46
  %v122 = vunpack.c.l.b16 %v47
  %v123 = vunpack.c.l.b16 %v48
  %v124 = vunpack.c.l.b16 %v49
  %v125 = vunpack.c.l.b16 %v50
  %v126 = vunpack.c.l.b16 %v51
  %v127 = vunpack.c.l.b16 %v52
  %v128 = vpack.c.b16 %v97, %v96
  %v129 = vpack.c.b16 %v99, %v98
  %v130 = vpack.c.b16 %v101, %v100
  %v131 = vpack.c.b16 %v103, %v102
  %v132 = vpack.c.b16 %v105, %v104
  %v133 = vpack.c.b16 %v107, %v106
  %v134 = vpack.c.b16 %v109, %v108
  %v135 = vpack.c.b16 %v111, %v110
  %v136 = vpack.c.b16 %v113, %v112
  %v137 = vpack.c.b16 %v115, %v114
  %v138 = vpack.c.b16 %v117, %v116
  %v139 = vpack.c.b16 %v119, %v118
  %v140 = vpack.c.b16 %v121, %v120
  %v141 = vpack.c.b16 %v123, %v122
  %v142 = vpack.c.b16 %v125, %v124
  %v143 = vpack.c.b16 %v127, %v126
  %v148 = vunpack.c.l.b16 %v53
  %v149 = vunpack.c.l.b16 %v54
  %v150 = vunpack.c.l.b16 %v55
  %v151 = vunpack.c.l.b16 %v56
  %v152 = vpack.c.b16 %v149, %v148
  %v153 = vpack.c.b16 %v151, %v150
  %vm156 = vcmask 261120
  %v158 = vsel %vm156, %v128, 0
  %v161 = vsel %vm156, %v129, 0
  %v164 = vsel %vm156, %v130, 0
  %v167 = vsel %vm156, %v131, 0
  %v170 = vsel %vm156, %v132, 0
  %v173 = vsel %vm156, %v133, 0
  %v176 = vsel %vm156, %v134, 0
  %v179 = vsel %vm156, %v135, 0
  %v182 = vsel %vm156, %v136, 0
  %v185 = vsel %vm156, %v137, 0
  %v188 = vsel %vm156, %v138, 0
  %v191 = vsel %vm156, %v139, 0
  %v194 = vsel %vm156, %v140, 0
  %v197 = vsel %vm156, %v141, 0
  %v200 = vsel %vm156, %v142, 0
  %v203 = vsel %vm156, %v143, 0
  %205 = vmatprep.subr.bf16.mxu0 0
  %206 = vmatpush1.bf16.msra.mxu0 %v152
  %207 = vmatprep.subr.bf16.mxu0 0
  %208 = vmatpush1.bf16.msra.mxu0 %v153
  %209 = vmatprep.subr.bf16.mxu0 0
  %210 = vmatpush1.bf16.msra.mxu0 0
  %211 = vmatprep.subr.bf16.mxu0 0
  %212 = vmatpush1.bf16.msra.mxu0 0
  %213 = vmatprep.subr.bf16.mxu0 0
  %214 = vmatpush1.bf16.msra.mxu0 0
  %215 = vmatprep.subr.bf16.mxu0 0
  %216 = vmatpush1.bf16.msra.mxu0 0
  %217 = vmatprep.subr.bf16.mxu0 0
  %218 = vmatpush1.bf16.msra.mxu0 0
  %219 = vmatprep.subr.bf16.mxu0 0
  %220 = vmatpush1.bf16.msra.mxu0 0
  %221 = vmatprep.subr.bf16.mxu0 0
  %222 = vmatpush1.bf16.msra.mxu0 0
  %223 = vmatprep.subr.bf16.mxu0 0
  %224 = vmatpush1.bf16.msra.mxu0 0
  %225 = vmatprep.subr.bf16.mxu0 0
  %226 = vmatpush1.bf16.msra.mxu0 0
  %227 = vmatprep.subr.bf16.mxu0 0
  %228 = vmatpush1.bf16.msra.mxu0 0
  %229 = vmatprep.subr.bf16.mxu0 0
  %230 = vmatpush1.bf16.msra.mxu0 0
  %231 = vmatprep.subr.bf16.mxu0 0
  %232 = vmatpush1.bf16.msra.mxu0 0
  %233 = vmatprep.subr.bf16.mxu0 0
  %234 = vmatpush1.bf16.msra.mxu0 0
  %235 = vmatprep.subr.bf16.mxu0 0
  %236 = vmatpush1.bf16.msra.mxu0 0
  %237 = vmatprep.mubr.bf16.mxu0 0
  %238 = vmatmul.mubr.bf16.gmra.mrb[0].mxu0 %v158
  %v239 = vpop.f32.mrb[0].mxu0
  %v240 = vadd.f32 %v62, %v239
  %v241 = vpop.f32.mrb[0].mxu0
  %v242 = vpop.f32.mrb[0].mxu0
  %v243 = vadd.f32 %v62, %v242
  %v244 = vpop.f32.mrb[0].mxu0
  %245 = vmatprep.mubr.bf16.mxu0 0
  %246 = vmatmul.mubr.bf16.gmra.mrb[0].mxu0 %v161
  %v247 = vpop.f32.mrb[0].mxu0
  %v248 = vadd.f32 %v62, %v247
  %v249 = vpop.f32.mrb[0].mxu0
  %v250 = vpop.f32.mrb[0].mxu0
  %v251 = vadd.f32 %v62, %v250
  %v252 = vpop.f32.mrb[0].mxu0
  %253 = vmatprep.mubr.bf16.mxu0 0
  %254 = vmatmul.mubr.bf16.gmra.mrb[0].mxu0 %v164
  %v255 = vpop.f32.mrb[0].mxu0
  %v256 = vadd.f32 %v62, %v255
  %v257 = vpop.f32.mrb[0].mxu0
  %v258 = vpop.f32.mrb[0].mxu0
  %v259 = vadd.f32 %v62, %v258
  %v260 = vpop.f32.mrb[0].mxu0
  %261 = vmatprep.mubr.bf16.mxu0 0
  %262 = vmatmul.mubr.bf16.gmra.mrb[0].mxu0 %v167
  %v263 = vpop.f32.mrb[0].mxu0
  %v264 = vadd.f32 %v62, %v263
  %v265 = vpop.f32.mrb[0].mxu0
  %v266 = vpop.f32.mrb[0].mxu0
  %v267 = vadd.f32 %v62, %v266
  %v268 = vpop.f32.mrb[0].mxu0
  %269 = vmatprep.mubr.bf16.mxu0 0
  %270 = vmatmul.mubr.bf16.gmra.mrb[0].mxu0 %v170
  %v271 = vpop.f32.mrb[0].mxu0
  %v272 = vadd.f32 %v62, %v271
  %v273 = vpop.f32.mrb[0].mxu0
  %v274 = vpop.f32.mrb[0].mxu0
  %v275 = vadd.f32 %v62, %v274
  %v276 = vpop.f32.mrb[0].mxu0
  %277 = vmatprep.mubr.bf16.mxu0 0
  %278 = vmatmul.mubr.bf16.gmra.mrb[0].mxu0 %v173
  %v279 = vpop.f32.mrb[0].mxu0
  %v280 = vadd.f32 %v62, %v279
  %v281 = vpop.f32.mrb[0].mxu0
  %v282 = vpop.f32.mrb[0].mxu0
  %v283 = vadd.f32 %v62, %v282
  %v284 = vpop.f32.mrb[0].mxu0
  %285 = vmatprep.mubr.bf16.mxu0 0
  %286 = vmatmul.mubr.bf16.gmra.mrb[0].mxu0 %v176
  %v287 = vpop.f32.mrb[0].mxu0
  %v288 = vadd.f32 %v62, %v287
  %v289 = vpop.f32.mrb[0].mxu0
  %v290 = vpop.f32.mrb[0].mxu0
  %v291 = vadd.f32 %v62, %v290
  %v292 = vpop.f32.mrb[0].mxu0
  %293 = vmatprep.mubr.bf16.mxu0 0
  %294 = vmatmul.mubr.bf16.gmra.mrb[0].mxu0 %v179
  %v295 = vpop.f32.mrb[0].mxu0
  %v296 = vadd.f32 %v62, %v295
  %v297 = vpop.f32.mrb[0].mxu0
  %v298 = vpop.f32.mrb[0].mxu0
  %v299 = vadd.f32 %v62, %v298
  %v300 = vpop.f32.mrb[0].mxu0
  %301 = vmatprep.mubr.bf16.mxu0 0
  %302 = vmatmul.mubr.bf16.gmra.mrb[0].mxu0 %v182
  %v303 = vpop.f32.mrb[0].mxu0
  %v304 = vadd.f32 %v62, %v303
  %v305 = vpop.f32.mrb[0].mxu0
  %v306 = vpop.f32.mrb[0].mxu0
  %v307 = vadd.f32 %v62, %v306
  %v308 = vpop.f32.mrb[0].mxu0
  %309 = vmatprep.mubr.bf16.mxu0 0
  %310 = vmatmul.mubr.bf16.gmra.mrb[0].mxu0 %v185
  %v311 = vpop.f32.mrb[0].mxu0
  %v312 = vadd.f32 %v62, %v311
  %v313 = vpop.f32.mrb[0].mxu0
  %v314 = vpop.f32.mrb[0].mxu0
  %v315 = vadd.f32 %v62, %v314
  %v316 = vpop.f32.mrb[0].mxu0
  %317 = vmatprep.mubr.bf16.mxu0 0
  %318 = vmatmul.mubr.bf16.gmra.mrb[0].mxu0 %v188
  %v319 = vpop.f32.mrb[0].mxu0
  %v320 = vadd.f32 %v62, %v319
  %v321 = vpop.f32.mrb[0].mxu0
  %v322 = vpop.f32.mrb[0].mxu0
  %v323 = vadd.f32 %v62, %v322
  %v324 = vpop.f32.mrb[0].mxu0
  %325 = vmatprep.mubr.bf16.mxu0 0
  %326 = vmatmul.mubr.bf16.gmra.mrb[0].mxu0 %v191
  %v327 = vpop.f32.mrb[0].mxu0
  %v328 = vadd.f32 %v62, %v327
  %v329 = vpop.f32.mrb[0].mxu0
  %v330 = vpop.f32.mrb[0].mxu0
  %v331 = vadd.f32 %v62, %v330
  %v332 = vpop.f32.mrb[0].mxu0
  %333 = vmatprep.mubr.bf16.mxu0 0
  %334 = vmatmul.mubr.bf16.gmra.mrb[0].mxu0 %v194
  %v335 = vpop.f32.mrb[0].mxu0
  %v336 = vadd.f32 %v62, %v335
  %v337 = vpop.f32.mrb[0].mxu0
  %v338 = vpop.f32.mrb[0].mxu0
  %v339 = vadd.f32 %v62, %v338
  %v340 = vpop.f32.mrb[0].mxu0
  %341 = vmatprep.mubr.bf16.mxu0 0
  %342 = vmatmul.mubr.bf16.gmra.mrb[0].mxu0 %v197
  %v343 = vpop.f32.mrb[0].mxu0
  %v344 = vadd.f32 %v62, %v343
  %v345 = vpop.f32.mrb[0].mxu0
  %v346 = vpop.f32.mrb[0].mxu0
  %v347 = vadd.f32 %v62, %v346
  %v348 = vpop.f32.mrb[0].mxu0
  %349 = vmatprep.mubr.bf16.mxu0 0
  %350 = vmatmul.mubr.bf16.gmra.mrb[0].mxu0 %v200
  %v351 = vpop.f32.mrb[0].mxu0
  %v352 = vadd.f32 %v62, %v351
  %v353 = vpop.f32.mrb[0].mxu0
  %v354 = vpop.f32.mrb[0].mxu0
  %v355 = vadd.f32 %v62, %v354
  %v356 = vpop.f32.mrb[0].mxu0
  %357 = vmatprep.mubr.bf16.mxu0 0
  %358 = vmatmul.mubr.bf16.gmra.mrb[0].mxu0 %v203
  %v359 = vpop.f32.mrb[0].mxu0
  %v360 = vadd.f32 %v62, %v359
  %v361 = vpop.f32.mrb[0].mxu0
  %v362 = vpop.f32.mrb[0].mxu0
  %v363 = vadd.f32 %v62, %v362
  %v364 = vpop.f32.mrb[0].mxu0
  %365 = vdwg.mxu0
  %v366 = vmax.f32 %v240, 0.0
  %v367 = vmax.f32 %v243, 0.0
  %v368 = vmax.f32 %v248, 0.0
  %v369 = vmax.f32 %v251, 0.0
  %v370 = vmax.f32 %v256, 0.0
  %v371 = vmax.f32 %v259, 0.0
  %v372 = vmax.f32 %v264, 0.0
  %v373 = vmax.f32 %v267, 0.0
  %v374 = vmax.f32 %v272, 0.0
  %v375 = vmax.f32 %v275, 0.0
  %v376 = vmax.f32 %v280, 0.0
  %v377 = vmax.f32 %v283, 0.0
  %v378 = vmax.f32 %v288, 0.0
  %v379 = vmax.f32 %v291, 0.0
  %v380 = vmax.f32 %v296, 0.0
  %v381 = vmax.f32 %v299, 0.0
  %v382 = vmax.f32 %v304, 0.0
  %v383 = vmax.f32 %v307, 0.0
  %v384 = vmax.f32 %v312, 0.0
  %v385 = vmax.f32 %v315, 0.0
  %v386 = vmax.f32 %v320, 0.0
  %v387 = vmax.f32 %v323, 0.0
  %v388 = vmax.f32 %v328, 0.0
  %v389 = vmax.f32 %v331, 0.0
  %v390 = vmax.f32 %v336, 0.0
  %v391 = vmax.f32 %v339, 0.0
  %v392 = vmax.f32 %v344, 0.0
  %v393 = vmax.f32 %v347, 0.0
  %v394 = vmax.f32 %v352, 0.0
  %v395 = vmax.f32 %v355, 0.0
  %v396 = vmax.f32 %v360, 0.0
  %v397 = vmax.f32 %v363, 0.0
  %v398 = vpack.c.bf16 %v367, %v366
  %v399 = vpack.c.bf16 %v369, %v368
  %v400 = vpack.c.bf16 %v371, %v370
  %v401 = vpack.c.bf16 %v373, %v372
  %v402 = vpack.c.bf16 %v375, %v374
  %v403 = vpack.c.bf16 %v377, %v376
  %v404 = vpack.c.bf16 %v379, %v378
  %v405 = vpack.c.bf16 %v381, %v380
  %v406 = vpack.c.bf16 %v383, %v382
  %v407 = vpack.c.bf16 %v385, %v384
  %v408 = vpack.c.bf16 %v387, %v386
  %v409 = vpack.c.bf16 %v389, %v388
  %v410 = vpack.c.bf16 %v391, %v390
  %v411 = vpack.c.bf16 %v393, %v392
  %v412 = vpack.c.bf16 %v395, %v394
  %v413 = vpack.c.bf16 %v397, %v396
  %v414 = vld [vmem:[%s3] sm:$0xf]
  %v415 = vld [vmem:[%s3 + $0x4] sm:$0xf]
  %v416 = vld [vmem:[%s3 + $0x8] sm:$0xf]
  %v417 = vld [vmem:[%s3 + $0xc] sm:$0xf]
  %v418 = vld [vmem:[%s3 + $0x10] sm:$0xf]
  %v419 = vld [vmem:[%s3 + $0x14] sm:$0xf]
  %v420 = vld [vmem:[%s3 + $0x18] sm:$0xf]
  %v421 = vld [vmem:[%s3 + $0x1c] sm:$0xf]
  %v422 = vld [vmem:[%s3 + $0x20] sm:$0xf]
  %v423 = vld [vmem:[%s3 + $0x24] sm:$0xf]
  %v424 = vld [vmem:[%s3 + $0x28] sm:$0xf]
  %v425 = vld [vmem:[%s3 + $0x2c] sm:$0xf]
  %v426 = vld [vmem:[%s3 + $0x30] sm:$0xf]
  %v427 = vld [vmem:[%s3 + $0x34] sm:$0xf]
  %v428 = vld [vmem:[%s3 + $0x38] sm:$0xf]
  %v429 = vld [vmem:[%s3 + $0x3c] sm:$0xf]
  %v430 = vld [vmem:[%s4] sm:$0x1]
  %v432 = vlaneseq
  %v433 = vshrl.u32 %v432, 7
  %v434 = vsub.s32 0, %v433
  %v435 = vrot.slane %v430, %v434
  %v453 = vunpack.c.l.b16 %v414
  %v454 = vunpack.c.l.b16 %v415
  %v455 = vunpack.c.l.b16 %v416
  %v456 = vunpack.c.l.b16 %v417
  %v457 = vunpack.c.l.b16 %v418
  %v458 = vunpack.c.l.b16 %v419
  %v459 = vunpack.c.l.b16 %v420
  %v460 = vunpack.c.l.b16 %v421
  %v461 = vunpack.c.l.b16 %v422
  %v462 = vunpack.c.l.b16 %v423
  %v463 = vunpack.c.l.b16 %v424
  %v464 = vunpack.c.l.b16 %v425
  %v465 = vunpack.c.l.b16 %v426
  %v466 = vunpack.c.l.b16 %v427
  %v467 = vunpack.c.l.b16 %v428
  %v468 = vunpack.c.l.b16 %v429
  %v469 = vpack.c.b16 %v454, %v453
  %v470 = vpack.c.b16 %v456, %v455
  %v471 = vpack.c.b16 %v458, %v457
  %v472 = vpack.c.b16 %v460, %v459
  %v473 = vpack.c.b16 %v462, %v461
  %v474 = vpack.c.b16 %v464, %v463
  %v475 = vpack.c.b16 %v466, %v465
  %v476 = vpack.c.b16 %v468, %v467
  %485 = vmatprep.subr.bf16.mxu0 0
  %486 = vmatpush1.bf16.msra.mxu0 %v469
  %487 = vmatprep.subr.bf16.mxu0 0
  %488 = vmatpush1.bf16.msra.mxu0 %v470
  %489 = vmatprep.subr.bf16.mxu0 0
  %490 = vmatpush1.bf16.msra.mxu0 %v471
  %491 = vmatprep.subr.bf16.mxu0 0
  %492 = vmatpush1.bf16.msra.mxu0 %v472
  %493 = vmatprep.subr.bf16.mxu0 0
  %494 = vmatpush1.bf16.msra.mxu0 %v473
  %495 = vmatprep.subr.bf16.mxu0 0
  %496 = vmatpush1.bf16.msra.mxu0 %v474
  %497 = vmatprep.subr.bf16.mxu0 0
  %498 = vmatpush1.bf16.msra.mxu0 %v475
  %499 = vmatprep.subr.bf16.mxu0 0
  %500 = vmatpush1.bf16.msra.mxu0 %v476
  %501 = vmatprep.subr.bf16.mxu0 0
  %502 = vmatpush1.bf16.msra.mxu0 0
  %503 = vmatprep.subr.bf16.mxu0 0
  %504 = vmatpush1.bf16.msra.mxu0 0
  %505 = vmatprep.subr.bf16.mxu0 0
  %506 = vmatpush1.bf16.msra.mxu0 0
  %507 = vmatprep.subr.bf16.mxu0 0
  %508 = vmatpush1.bf16.msra.mxu0 0
  %509 = vmatprep.subr.bf16.mxu0 0
  %510 = vmatpush1.bf16.msra.mxu0 0
  %511 = vmatprep.subr.bf16.mxu0 0
  %512 = vmatpush1.bf16.msra.mxu0 0
  %513 = vmatprep.subr.bf16.mxu0 0
  %514 = vmatpush1.bf16.msra.mxu0 0
  %515 = vmatprep.subr.bf16.mxu0 0
  %516 = vmatpush1.bf16.msra.mxu0 0
  %517 = vmatprep.mubr.bf16.mxu0 0
  %518 = vmatmul.mubr.bf16.gmra.mrb[0].mxu0 %v398
  %v519 = vpop.f32.mrb[0].mxu0
  %v520 = vadd.f32 %v435, %v519
  %v521 = vpop.f32.mrb[0].mxu0
  %v522 = vpop.f32.mrb[0].mxu0
  %v523 = vadd.f32 %v435, %v522
  %v524 = vpop.f32.mrb[0].mxu0
  %525 = vmatprep.mubr.bf16.mxu0 0
  %526 = vmatmul.mubr.bf16.gmra.mrb[0].mxu0 %v399
  %v527 = vpop.f32.mrb[0].mxu0
  %v528 = vadd.f32 %v435, %v527
  %v529 = vpop.f32.mrb[0].mxu0
  %v530 = vpop.f32.mrb[0].mxu0
  %v531 = vadd.f32 %v435, %v530
  %v532 = vpop.f32.mrb[0].mxu0
  %533 = vmatprep.mubr.bf16.mxu0 0
  %534 = vmatmul.mubr.bf16.gmra.mrb[0].mxu0 %v400
  %v535 = vpop.f32.mrb[0].mxu0
  %v536 = vadd.f32 %v435, %v535
  %v537 = vpop.f32.mrb[0].mxu0
  %v538 = vpop.f32.mrb[0].mxu0
  %v539 = vadd.f32 %v435, %v538
  %v540 = vpop.f32.mrb[0].mxu0
  %541 = vmatprep.mubr.bf16.mxu0 0
  %542 = vmatmul.mubr.bf16.gmra.mrb[0].mxu0 %v401
  %v543 = vpop.f32.mrb[0].mxu0
  %v544 = vadd.f32 %v435, %v543
  %v545 = vpop.f32.mrb[0].mxu0
  %v546 = vpop.f32.mrb[0].mxu0
  %v547 = vadd.f32 %v435, %v546
  %v548 = vpop.f32.mrb[0].mxu0
  %549 = vmatprep.mubr.bf16.mxu0 0
  %550 = vmatmul.mubr.bf16.gmra.mrb[0].mxu0 %v402
  %v551 = vpop.f32.mrb[0].mxu0
  %v552 = vadd.f32 %v435, %v551
  %v553 = vpop.f32.mrb[0].mxu0
  %v554 = vpop.f32.mrb[0].mxu0
  %v555 = vadd.f32 %v435, %v554
  %v556 = vpop.f32.mrb[0].mxu0
  %557 = vmatprep.mubr.bf16.mxu0 0
  %558 = vmatmul.mubr.bf16.gmra.mrb[0].mxu0 %v403
  %v559 = vpop.f32.mrb[0].mxu0
  %v560 = vadd.f32 %v435, %v559
  %v561 = vpop.f32.mrb[0].mxu0
  %v562 = vpop.f32.mrb[0].mxu0
  %v563 = vadd.f32 %v435, %v562
  %v564 = vpop.f32.mrb[0].mxu0
  %565 = vmatprep.mubr.bf16.mxu0 0
  %566 = vmatmul.mubr.bf16.gmra.mrb[0].mxu0 %v404
  %v567 = vpop.f32.mrb[0].mxu0
  %v568 = vadd.f32 %v435, %v567
  %v569 = vpop.f32.mrb[0].mxu0
  %v570 = vpop.f32.mrb[0].mxu0
  %v571 = vadd.f32 %v435, %v570
  %v572 = vpop.f32.mrb[0].mxu0
  %573 = vmatprep.mubr.bf16.mxu0 0
  %574 = vmatmul.mubr.bf16.gmra.mrb[0].mxu0 %v405
  %v575 = vpop.f32.mrb[0].mxu0
  %v576 = vadd.f32 %v435, %v575
  %v577 = vpop.f32.mrb[0].mxu0
  %v578 = vpop.f32.mrb[0].mxu0
  %v579 = vadd.f32 %v435, %v578
  %v580 = vpop.f32.mrb[0].mxu0
  %581 = vmatprep.mubr.bf16.mxu0 0
  %582 = vmatmul.mubr.bf16.gmra.mrb[0].mxu0 %v406
  %v583 = vpop.f32.mrb[0].mxu0
  %v584 = vadd.f32 %v435, %v583
  %v585 = vpop.f32.mrb[0].mxu0
  %v586 = vpop.f32.mrb[0].mxu0
  %v587 = vadd.f32 %v435, %v586
  %v588 = vpop.f32.mrb[0].mxu0
  %589 = vmatprep.mubr.bf16.mxu0 0
  %590 = vmatmul.mubr.bf16.gmra.mrb[0].mxu0 %v407
  %v591 = vpop.f32.mrb[0].mxu0
  %v592 = vadd.f32 %v435, %v591
  %v593 = vpop.f32.mrb[0].mxu0
  %v594 = vpop.f32.mrb[0].mxu0
  %v595 = vadd.f32 %v435, %v594
  %v596 = vpop.f32.mrb[0].mxu0
  %597 = vmatprep.mubr.bf16.mxu0 0
  %598 = vmatmul.mubr.bf16.gmra.mrb[0].mxu0 %v408
  %v599 = vpop.f32.mrb[0].mxu0
  %v600 = vadd.f32 %v435, %v599
  %v601 = vpop.f32.mrb[0].mxu0
  %v602 = vpop.f32.mrb[0].mxu0
  %v603 = vadd.f32 %v435, %v602
  %v604 = vpop.f32.mrb[0].mxu0
  %605 = vmatprep.mubr.bf16.mxu0 0
  %606 = vmatmul.mubr.bf16.gmra.mrb[0].mxu0 %v409
  %v607 = vpop.f32.mrb[0].mxu0
  %v608 = vadd.f32 %v435, %v607
  %v609 = vpop.f32.mrb[0].mxu0
  %v610 = vpop.f32.mrb[0].mxu0
  %v611 = vadd.f32 %v435, %v610
  %v612 = vpop.f32.mrb[0].mxu0
  %613 = vmatprep.mubr.bf16.mxu0 0
  %614 = vmatmul.mubr.bf16.gmra.mrb[0].mxu0 %v410
  %v615 = vpop.f32.mrb[0].mxu0
  %v616 = vadd.f32 %v435, %v615
  %v617 = vpop.f32.mrb[0].mxu0
  %v618 = vpop.f32.mrb[0].mxu0
  %v619 = vadd.f32 %v435, %v618
  %v620 = vpop.f32.mrb[0].mxu0
  %621 = vmatprep.mubr.bf16.mxu0 0
  %622 = vmatmul.mubr.bf16.gmra.mrb[0].mxu0 %v411
  %v623 = vpop.f32.mrb[0].mxu0
  %v624 = vadd.f32 %v435, %v623
  %v625 = vpop.f32.mrb[0].mxu0
  %v626 = vpop.f32.mrb[0].mxu0
  %v627 = vadd.f32 %v435, %v626
  %v628 = vpop.f32.mrb[0].mxu0
  %629 = vmatprep.mubr.bf16.mxu0 0
  %630 = vmatmul.mubr.bf16.gmra.mrb[0].mxu0 %v412
  %v631 = vpop.f32.mrb[0].mxu0
  %v632 = vadd.f32 %v435, %v631
  %v633 = vpop.f32.mrb[0].mxu0
  %v634 = vpop.f32.mrb[0].mxu0
  %v635 = vadd.f32 %v435, %v634
  %v636 = vpop.f32.mrb[0].mxu0
  %637 = vmatprep.mubr.bf16.mxu0 0
  %638 = vmatmul.mubr.bf16.gmra.mrb[0].mxu0 %v413
  %v639 = vpop.f32.mrb[0].mxu0
  %v640 = vadd.f32 %v435, %v639
  %v641 = vpop.f32.mrb[0].mxu0
  %v642 = vpop.f32.mrb[0].mxu0
  %v643 = vadd.f32 %v435, %v642
  %v644 = vpop.f32.mrb[0].mxu0
  %645 = vdwg.mxu0
  %646 = vst [vmem:[%s5] sm:$0xff] %v520
  %647 = vst [vmem:[%s5 + $0x8] sm:$0xff] %v523
  %648 = vst [vmem:[%s5 + $0x10] sm:$0xff] %v528
  %649 = vst [vmem:[%s5 + $0x18] sm:$0xff] %v531
  %650 = vst [vmem:[%s5 + $0x20] sm:$0xff] %v536
  %651 = vst [vmem:[%s5 + $0x28] sm:$0xff] %v539
  %652 = vst [vmem:[%s5 + $0x30] sm:$0xff] %v544
  %653 = vst [vmem:[%s5 + $0x38] sm:$0xff] %v547
  %654 = vst [vmem:[%s5 + $0x40] sm:$0xff] %v552
  %655 = vst [vmem:[%s5 + $0x48] sm:$0xff] %v555
  %656 = vst [vmem:[%s5 + $0x50] sm:$0xff] %v560
  %657 = vst [vmem:[%s5 + $0x58] sm:$0xff] %v563
  %658 = vst [vmem:[%s5 + $0x60] sm:$0xff] %v568
  %659 = vst [vmem:[%s5 + $0x68] sm:$0xff] %v571
  %660 = vst [vmem:[%s5 + $0x70] sm:$0xff] %v576
  %661 = vst [vmem:[%s5 + $0x78] sm:$0xff] %v579
  %662 = vst [vmem:[%s5 + $0x80] sm:$0xff] %v584
  %663 = vst [vmem:[%s5 + $0x88] sm:$0xff] %v587
  %664 = vst [vmem:[%s5 + $0x90] sm:$0xff] %v592
  %665 = vst [vmem:[%s5 + $0x98] sm:$0xff] %v595
  %666 = vst [vmem:[%s5 + $0xa0] sm:$0xff] %v600
  %667 = vst [vmem:[%s5 + $0xa8] sm:$0xff] %v603
  %668 = vst [vmem:[%s5 + $0xb0] sm:$0xff] %v608
  %669 = vst [vmem:[%s5 + $0xb8] sm:$0xff] %v611
  %670 = vst [vmem:[%s5 + $0xc0] sm:$0xff] %v616
  %671 = vst [vmem:[%s5 + $0xc8] sm:$0xff] %v619
  %672 = vst [vmem:[%s5 + $0xd0] sm:$0xff] %v624
  %673 = vst [vmem:[%s5 + $0xd8] sm:$0xff] %v627
  %674 = vst [vmem:[%s5 + $0xe0] sm:$0xff] %v632
  %675 = vst [vmem:[%s5 + $0xe8] sm:$0xff] %v635
  %676 = vst [vmem:[%s5 + $0xf0] sm:$0xff] %v640
  %677 = vst [vmem:[%s5 + $0xf8] sm:$0xff] %v643
  // Predicated region
  $region22: #{mlp_forward.1} parent=0 // pred_check
    _
  $region23: #{mlp_forward.1} parent=0 // pred_check_branch
    %679 = sbr.rel (0) target = $region25
  $region24: #{mlp_forward.1} parent=0 // pred_region
    _
  $region25: #{mlp_forward.1} parent=0 // pred_fallthru
    _
  // Predicated region
  $region26: #{mlp_forward.1} parent=0 // pred_check
    _
  $region27: #{mlp_forward.1} parent=0 // pred_check_branch
    %681 = sbr.rel (0) target = $region29
  $region28: #{mlp_forward.1} parent=0 // pred_region
    _
  $region29: #{mlp_forward.1} parent=0 // pred_fallthru
    _

</llo_original>
